<compile_context>
chip_gen: v7x
topology: tpu7x:2x2x1
jax: 0.10.0
libtpu: 0.0.40
codegen_flags: <defaults>
</compile_context>

<pallas_src>
import functools

import jax
import jax.numpy as jnp
from jax.experimental import pallas as pl
from jax.experimental.pallas import tpu as pltpu

EPS = 1e-5


def _round_up(n, m):
    return ((n + m - 1) // m) * m


def _prenorm_kernel(x_ref, w_ref, b_ref, o_ref, xn_ref, *, d_true):
    """One (row-tile, N-tile) grid step of Linear(LayerNorm(x)).

    x_ref : (tr, Dp)  activations (input dtype)
    w_ref : (Dp, tn)  folded weight block (bf16)
    b_ref : (1, tn)   folded bias block (f32)
    o_ref : (tr, tn)  output block
    xn_ref: (tr, Dp)  bf16 scratch holding normalized rows; filled once per
                      row tile (j == 0) and reused across all N tiles.
    """

    @pl.when(pl.program_id(1) == 0)
    def _():
        x = x_ref[...].astype(jnp.float32)
        d_pad = x.shape[-1]
        inv_d = jnp.float32(1.0 / d_true)
        if d_true == d_pad:
            # No lane padding: standard two-pass (biased) LayerNorm stats.
            mean = jnp.sum(x, axis=-1, keepdims=True) * inv_d
            centered = x - mean
            var = jnp.sum(centered * centered, axis=-1, keepdims=True) * inv_d
        else:
            # Lane-padded input: padded lanes are zero, so plain sums already
            # give the true first/second moments (no iota/mask math).  Padded
            # lanes of `centered` are non-zero (-mean) but only ever multiply
            # all-zero weight rows, so the matmul is unaffected.
            mean = jnp.sum(x, axis=-1, keepdims=True) * inv_d
            ex2 = jnp.sum(x * x, axis=-1, keepdims=True) * inv_d
            var = jnp.maximum(ex2 - mean * mean, 0.0)
            centered = x - mean
        xn_ref[...] = (centered * jax.lax.rsqrt(var + EPS)).astype(xn_ref.dtype)

    # fn(.) : Linear with the LayerNorm affine already folded into W'/b'.
    # bf16 x bf16 -> f32 accumulate on the MXU.
    out = jnp.dot(xn_ref[...], w_ref[...],
                  preferred_element_type=jnp.float32) + b_ref[...]
    o_ref[...] = out.astype(o_ref.dtype)


def fold_prenorm_params(gamma, beta, w, w_bias):
    """Fold the LayerNorm affine into the Linear layer, pad, cast to bf16.

    Done ONCE per parameter set (hoisted out of the per-forward path so the
    f32 -> bf16 weight re-cast does not burn HBM bandwidth every call).
        W' = diag(gamma) @ W        b' = beta @ W + b
    """
    D = w.shape[0]
    Dp = max(_round_up(D, 128), 128)
    w_f32 = w.astype(jnp.float32)
    w_fold = gamma.astype(jnp.float32)[:, None] * w_f32                 # (D, D)
    b_fold = beta.astype(jnp.float32) @ w_f32 + w_bias.astype(jnp.float32)
    w_p = jnp.zeros((Dp, Dp), jnp.bfloat16).at[:D, :D].set(
        w_fold.astype(jnp.bfloat16))
    b_p = jnp.zeros((1, Dp), jnp.float32).at[:, :D].set(b_fold.reshape(1, D))
    return w_p, b_p


def _pick_tiles(rows, Dp, itemsize):
    # Output-N tile: multiple of 256 when possible (v6e/v7x MXU is 2x256^2),
    # never below 128; must divide Dp (Dp is always a multiple of 128).
    if Dp <= 512:
        tn = Dp
    elif Dp % 512 == 0:
        tn = 512
    elif Dp % 256 == 0:
        tn = 256
    else:
        tn = 128

    # Row tile: largest candidate whose resident buffers fit a fraction of the
    # per-generation VMEM (128 MiB v5e/v6e, 64 MiB v7x).
    try:
        vmem_cap = int(pltpu.get_tpu_info().vmem_capacity_bytes)
    except Exception:  # conservative fallback (matches v7x)
        vmem_cap = 64 * 1024 * 1024
    budget = int(vmem_cap * 0.55)

    def need(tr):
        return (2 * tr * Dp * itemsize      # x tiles (double-buffered)
                + 2 * tr * tn * itemsize    # out tiles (double-buffered)
                + 2 * Dp * tn * 2           # bf16 weight blocks (double-buffered)
                + 2 * tn * 4                # bias blocks
                + tr * Dp * 2               # xn scratch (bf16)
                + 4 * tr * Dp * 4)          # f32 intermediates headroom

    tr = 8
    for cand in (1024, 512, 256, 128, 64, 32, 16, 8):
        if need(cand) <= budget:
            tr = cand
            break
    tr = min(tr, _round_up(rows, 8))

    vmem_limit = int(min(vmem_cap - (4 << 20),
                         max(need(tr) + (4 << 20), 32 << 20)))
    return tr, tn, vmem_limit


def prenorm_forward(x, w_p, b_p, d_true):
    """x: (B, S, D) -> (B, S, D), computing Linear(LayerNorm(x)).

    `w_p` / `b_p` are the folded + lane-padded parameters produced once by
    fold_prenorm_params and reused across calls.
    """
    B, S, D = x.shape
    assert D == d_true
    rows = B * S
    Dp = w_p.shape[0]

    x2 = x.reshape(rows, D)
    # Only materialize a padded copy when the lane dim actually needs padding.
    # Partial row tiles are handled by the cdiv grid (edge masking), so the
    # activations never take an extra HBM round-trip just for row padding.
    if Dp != D:
        x_p = jnp.zeros((rows, Dp), x.dtype).at[:, :D].set(x2)
    else:
        x_p = x2

    itemsize = jnp.dtype(x.dtype).itemsize
    tr, tn, vmem_limit = _pick_tiles(rows, Dp, itemsize)
    grid = (pl.cdiv(rows, tr), Dp // tn)

    out_p = pl.pallas_call(
        functools.partial(_prenorm_kernel, d_true=D),
        out_shape=jax.ShapeDtypeStruct((rows, Dp), x.dtype),
        grid_spec=pltpu.PrefetchScalarGridSpec(
            num_scalar_prefetch=0,
            grid=grid,
            in_specs=[
                pl.BlockSpec((tr, Dp), lambda i, j: (i, 0)),   # activations
                pl.BlockSpec((Dp, tn), lambda i, j: (0, j)),   # folded weight
                pl.BlockSpec((1, tn), lambda i, j: (0, j)),    # folded bias
            ],
            out_specs=pl.BlockSpec((tr, tn), lambda i, j: (i, j)),
            scratch_shapes=[pltpu.VMEM((tr, Dp), jnp.bfloat16)],
        ),
        compiler_params=pltpu.CompilerParams(
            # Row tiles are independent (megacore shards them).  The N axis is
            # "arbitrary" because the xn scratch is filled at j == 0 and
            # reused for j > 0 of the same row tile.
            dimension_semantics=("parallel", "arbitrary"),
            vmem_limit_bytes=vmem_limit),
    )(x_p, w_p, b_p)

    if Dp != D:
        out_p = out_p[:, :D]
    return out_p.reshape(B, S, D)


def _reference(x, gamma, beta, w, w_bias):
    xf = x.astype(jnp.float32)
    mean = jnp.mean(xf, axis=-1, keepdims=True)
    var = jnp.mean((xf - mean) ** 2, axis=-1, keepdims=True)
    xn = (xf - mean) / jnp.sqrt(var + EPS)
    y = xn * gamma + beta
    return (y @ w + w_bias).astype(x.dtype)


if __name__ == "__main__":
    key = jax.random.PRNGKey(0)
    B, S, D = 2, 8, 32

    kx, kw = jax.random.split(key)
    x = jax.random.normal(kx, (B, S, D), dtype=jnp.float32)

    # Deterministic parameter init (LayerNorm defaults: gamma=1, beta=0).
    gamma = jnp.ones((D,), dtype=jnp.float32)
    beta = jnp.zeros((D,), dtype=jnp.float32)
    # fn = Linear(D, D) with deterministic weights.
    w = (jax.random.normal(kw, (D, D), dtype=jnp.float32) / jnp.sqrt(D)).astype(
        jnp.float32)
    w_bias = jnp.zeros((D,), dtype=jnp.float32)

    # Fold + pad parameters once (hoisted out of the per-forward path).
    w_p, b_p = fold_prenorm_params(gamma, beta, w, w_bias)
    w_p, b_p = jax.block_until_ready((w_p, b_p))

    out = prenorm_forward(x, w_p, b_p, D)
    out = jax.block_until_ready(out)

    ref = _reference(x, gamma, beta, w, w_bias)
    assert out.shape == (B, S, D)
    # bf16-fed MXU + folded affine changes rounding slightly vs the pure-f32
    # reference; tolerance loosened accordingly.
    assert jnp.allclose(out, ref, atol=5e-2, rtol=5e-2), (
        float(jnp.max(jnp.abs(out - ref))))

    print("KERNEL_OK")
</pallas_src>

<mosaic_0001>
module attributes {stable_mosaic.version = 11 : i64} {
  func.func @_prenorm_kernel(%arg0: i32, %arg1: i32, %arg2: memref<16x128xf32, #tpu.memory_space<vmem>>, %arg3: memref<128x128xbf16, #tpu.memory_space<vmem>>, %arg4: memref<1x128xf32, #tpu.memory_space<vmem>>, %arg5: memref<16x128xf32, #tpu.memory_space<vmem>>, %arg6: memref<16x128xbf16, #tpu.memory_space<vmem>>) attributes {dimension_semantics = [#tpu.dimension_semantics<parallel>, #tpu.dimension_semantics<arbitrary>], iteration_bounds = array<i64: 1, 1>, scalar_prefetch = 0 : i64, scratch_operands = 1 : i64, tpu.core_type = #tpu.core_type<tc>, window_params = [{transform_indices = @transform_0, window_bounds = array<i64: 16, 128>}, {transform_indices = @transform_1, window_bounds = array<i64: 128, 128>}, {transform_indices = @transform_2, window_bounds = array<i64: 1, 128>}, {transform_indices = @transform_3, window_bounds = array<i64: 16, 128>}]} {
    %c0_i32 = arith.constant 0 : i32
    %0 = arith.cmpi eq, %arg1, %c0_i32 : i32
    %1 = arith.extui %0 : i1 to i32
    %c0_i32_0 = arith.constant 0 : i32
    %2 = arith.cmpi ne, %1, %c0_i32_0 : i32
    scf.if %2 {
      %c0_8 = arith.constant 0 : index
      %c0_9 = arith.constant 0 : index
      %10 = vector.load %arg2[%c0_8, %c0_9] : memref<16x128xf32, #tpu.memory_space<vmem>>, vector<16x128xf32>
      %cst_10 = arith.constant dense<0.000000e+00> : vector<16xf32>
      %11 = vector.multi_reduction <add>, %10, %cst_10 [1] : vector<16x128xf32> to vector<16xf32>
      %12 = vector.shape_cast %11 : vector<16xf32> to vector<16x1xf32>
      %cst_11 = arith.constant 3.125000e-02 : f32
      %13 = vector.broadcast %cst_11 : f32 to vector<16x1xf32>
      %14 = arith.mulf %12, %13 : vector<16x1xf32>
      %15 = arith.mulf %10, %10 : vector<16x128xf32>
      %cst_12 = arith.constant dense<0.000000e+00> : vector<16xf32>
      %16 = vector.multi_reduction <add>, %15, %cst_12 [1] : vector<16x128xf32> to vector<16xf32>
      %17 = vector.shape_cast %16 : vector<16xf32> to vector<16x1xf32>
      %cst_13 = arith.constant 3.125000e-02 : f32
      %18 = vector.broadcast %cst_13 : f32 to vector<16x1xf32>
      %19 = arith.mulf %17, %18 : vector<16x1xf32>
      %20 = arith.mulf %14, %14 : vector<16x1xf32>
      %21 = arith.subf %19, %20 : vector<16x1xf32>
      %cst_14 = arith.constant 0.000000e+00 : f32
      %22 = vector.broadcast %cst_14 : f32 to vector<16x1xf32>
      %23 = arith.maximumf %21, %22 : vector<16x1xf32>
      %24 = vector.broadcast %14 : vector<16x1xf32> to vector<16x128xf32>
      %25 = arith.subf %10, %24 : vector<16x128xf32>
      %cst_15 = arith.constant 9.99999974E-6 : f32
      %26 = vector.broadcast %cst_15 : f32 to vector<16x1xf32>
      %27 = arith.addf %23, %26 : vector<16x1xf32>
      %28 = math.rsqrt %27 : vector<16x1xf32>
      %29 = vector.broadcast %28 : vector<16x1xf32> to vector<16x128xf32>
      %30 = arith.mulf %25, %29 : vector<16x128xf32>
      %31 = arith.truncf %30 : vector<16x128xf32> to vector<16x128xbf16>
      %c0_16 = arith.constant 0 : index
      %c0_17 = arith.constant 0 : index
      %32 = vector.load %arg6[%c0_16, %c0_17] : memref<16x128xbf16, #tpu.memory_space<vmem>>, vector<16x128xbf16>
      tpu.vector_store %arg6[%c0_16, %c0_17], %31 {strides = array<i32>} : memref<16x128xbf16, #tpu.memory_space<vmem>>, vector<16x128xbf16>,
    } else {
    }
    %c0 = arith.constant 0 : index
    %c0_1 = arith.constant 0 : index
    %3 = vector.load %arg6[%c0, %c0_1] : memref<16x128xbf16, #tpu.memory_space<vmem>>, vector<16x128xbf16>
    %c0_2 = arith.constant 0 : index
    %c0_3 = arith.constant 0 : index
    %4 = vector.load %arg3[%c0_2, %c0_3] : memref<128x128xbf16, #tpu.memory_space<vmem>>, vector<128x128xbf16>
    %cst = arith.constant dense<0.000000e+00> : vector<16x128xf32>
    %5 = tpu.matmul %3, %4, %cst {dimension_numbers = #tpu.dot_dimension_numbers<[1], [0], [0], [1], [0, 0, 1, 1], [], []>} : vector<16x128xbf16>, vector<128x128xbf16>, vector<16x128xf32> -> vector<16x128xf32>
    %c0_4 = arith.constant 0 : index
    %c0_5 = arith.constant 0 : index
    %6 = vector.load %arg4[%c0_4, %c0_5] : memref<1x128xf32, #tpu.memory_space<vmem>>, vector<1x128xf32>
    %7 = vector.broadcast %6 : vector<1x128xf32> to vector<16x128xf32>
    %8 = arith.addf %5, %7 : vector<16x128xf32>
    %c0_6 = arith.constant 0 : index
    %c0_7 = arith.constant 0 : index
    %9 = vector.load %arg5[%c0_6, %c0_7] : memref<16x128xf32, #tpu.memory_space<vmem>>, vector<16x128xf32>
    tpu.vector_store %arg5[%c0_6, %c0_7], %8 {strides = array<i32>} : memref<16x128xf32, #tpu.memory_space<vmem>>, vector<16x128xf32>,
    return
  }
  func.func @transform_0(%arg0: i32, %arg1: i32) -> (i32, i32) {
    %c0_i32 = arith.constant 0 : i32
    %c0_i32_0 = arith.constant 0 : i32
    return %arg0, %c0_i32 : i32, i32
  }
  func.func @transform_1(%arg0: i32, %arg1: i32) -> (i32, i32) {
    %c0_i32 = arith.constant 0 : i32
    %c0_i32_0 = arith.constant 0 : i32
    return %c0_i32, %arg1 : i32, i32
  }
  func.func @transform_2(%arg0: i32, %arg1: i32) -> (i32, i32) {
    %c0_i32 = arith.constant 0 : i32
    %c0_i32_0 = arith.constant 0 : i32
    return %c0_i32, %arg1 : i32, i32
  }
  func.func @transform_3(%arg0: i32, %arg1: i32) -> (i32, i32) {
    %c0_i32 = arith.constant 0 : i32
    return %arg0, %arg1 : i32, i32
  }
}

</mosaic_0001>

<llo_original>
// kernel: tpu_custom_call.1
$region0: #{tpu_custom_call.1}
  #allocation0 [shape = 'u32[]', space=smem, size = 0x4, offset = 0x4, fixed_abs, tag = 'smem constant byte address 0x4 - core index']
  #allocation1 [shape = 'u32[144,128]{1,0:T(1,128)}', space=vmem, size = 0x12000, scoped, tag = 'internal scratch']
  #allocation2 [shape = 'bf16[16,128]{1,0:T(16,128)(2,1)}', space=vmem, size = 0x1000, scoped, tag = 'scratch operand']
  %s0 = inlined_call_operand.hbm [shape: f32[16,128], index: 0, kind: input, shape index: {}]
  %s1 = inlined_call_operand.hbm [shape: bf16[128,128], index: 1, kind: input, shape index: {}]
  %s2 = inlined_call_operand.vmem [shape: f32[1,128], index: 2, kind: input, shape index: {}]
  %s3 = inlined_call_operand.hbm [shape: f32[16,128], index: 3, kind: output, shape index: {}]
  %s4 = sld [smem:[#allocation0]]
  $region34: #{tpu_custom_call.1} parent=0
    _
  %s6 = ssub.s32 1, %s4
  %s7 = scalar_select 0, %s6, %s4
  $region1: #{tpu_custom_call.1} parent=0
    #allocation3 [shape = 'u8[8192]{0}', space=vmem, size = 0x2000, scoped, tag = 'input window, operand 0, single buffered']
    #allocation4 [shape = 's32[1]{0}', space=sflag, size = 0x4, scoped, tag = 'scoped memory for tpu_custom_call.1']
    #allocation5 [shape = 's32[1]{0}', space=sflag, size = 0x4, scoped, tag = 'scoped memory for tpu_custom_call.1']
    #allocation6 [shape = 'u8[32768]{0}', space=vmem, size = 0x8000, scoped, tag = 'input window, operand 1, single buffered']
    #allocation7 [shape = 's32[1]{0}', space=sflag, size = 0x4, scoped, tag = 'scoped memory for tpu_custom_call.1']
    #allocation8 [shape = 'u8[8192]{0}', space=vmem, size = 0x2000, scoped, tag = 'output window, operand 0, single buffered']
    %8 = vsyncpa [#allocation4], 0
    %9 = vsyncpa [#allocation7], 0
    %10 = vsyncpa [#allocation5], 0
    // Predicated region
    $region2: #{tpu_custom_call.1} parent=1 // pred_check
      _
    $region3: #{tpu_custom_call.1} parent=1 // pred_check_branch
      %12 = sbr.rel (0) target = $region5
    $region4: #{tpu_custom_call.1} parent=1 // pred_region
      %s14 = ssub.s32 256, 256
      %15 = vsyncadd [#allocation4], %s14
      %s16 = sshll.u32 [#allocation3], 4
      %s17 = int_to_ptr.vmem [resolvable:$true] %s16
      %22 = dma.hbm_to_vmem [thread:$0]  %s0, 256, %s17, [#allocation4], 128, 128, 8
    $region5: #{tpu_custom_call.1} parent=1 // pred_fallthru
      _
    // Predicated region
    $region6: #{tpu_custom_call.1} parent=1 // pred_check
      _
    $region7: #{tpu_custom_call.1} parent=1 // pred_check_branch
      %24 = sbr.rel (0) target = $region9
    $region8: #{tpu_custom_call.1} parent=1 // pred_region
      %s26 = ssub.s32 1024, 1024
      %27 = vsyncadd [#allocation7], %s26
      %s28 = sshll.u32 [#allocation6], 4
      %s29 = int_to_ptr.vmem [resolvable:$true] %s28
      %34 = dma.hbm_to_vmem [thread:$0]  %s1, 1024, %s29, [#allocation7], 64, 64, 4
    $region9: #{tpu_custom_call.1} parent=1 // pred_fallthru
      _
    // Predicated region
    $region10: #{tpu_custom_call.1} parent=1 // pred_check
      _
    $region11: #{tpu_custom_call.1} parent=1 // pred_check_branch
      %36 = sbr.rel (0) target = $region13
    $region12: #{tpu_custom_call.1} parent=1 // pred_region
      _
    $region13: #{tpu_custom_call.1} parent=1 // pred_fallthru
      _
    // Predicated region
    $region14: #{tpu_custom_call.1} parent=1 // pred_check
      _
    $region15: #{tpu_custom_call.1} parent=1 // pred_check_branch
      %38 = sbr.rel (0) target = $region17
    $region16: #{tpu_custom_call.1} parent=1 // pred_region
      %39 = dma.done [#allocation4], 256
    $region17: #{tpu_custom_call.1} parent=1 // pred_fallthru
      _
    // Predicated region
    $region18: #{tpu_custom_call.1} parent=1 // pred_check
      _
    $region19: #{tpu_custom_call.1} parent=1 // pred_check_branch
      %41 = sbr.rel (0) target = $region21
    $region20: #{tpu_custom_call.1} parent=1 // pred_region
      %42 = dma.done [#allocation7], 1024
    $region21: #{tpu_custom_call.1} parent=1 // pred_fallthru
      _
    %p44 = scmp.eq.s32.totalorder 0, 0
    // Predicated region
    $region22: #{tpu_custom_call.1} parent=1 // pred_check
      %p45 = pneg %p44
    $region23: #{tpu_custom_call.1} parent=1 // pred_check_branch
      %47 = sbr.rel (%p45) target = $region25
    $region24: #{tpu_custom_call.1} parent=1 // pred_region
      %v48 = vld [vmem:[#allocation3] sm:$0xff]
      %v49 = vld [vmem:[#allocation3 + $0x8] sm:$0xff]
      %50 = vadd.xlane.f32.xlu0 %v48
      %v51 = vpop.xlane.xlu0 %50
      %52 = vadd.xlane.f32.xlu0 %v49
      %v53 = vpop.xlane.xlu0 %52
      %v54 = vmul.f32 %v51, 0.03125
      %v55 = vmul.f32 %v53, 0.03125
      %v56 = vmul.f32 %v48, %v48
      %v57 = vmul.f32 %v49, %v49
      %58 = vadd.xlane.f32.xlu0 %v56
      %v59 = vpop.xlane.xlu0 %58
      %60 = vadd.xlane.f32.xlu0 %v57
      %v61 = vpop.xlane.xlu0 %60
      %v62 = vmul.f32 %v59, 0.03125
      %v63 = vmul.f32 %v61, 0.03125
      %v64 = vmul.f32 %v54, %v54
      %v65 = vmul.f32 %v55, %v55
      %v66 = vsub.f32 %v62, %v64
      %v67 = vsub.f32 %v63, %v65
      %v68 = vmax.f32 %v66, 0.0
      %v69 = vmax.f32 %v67, 0.0
      %v70 = vsub.f32 %v48, %v54
      %v71 = vsub.f32 %v49, %v55
      %v72 = vadd.f32 %v68, 1e-05
      %v73 = vadd.f32 %v69, 1e-05
      %v74 = vrsqrt.pop %v72
      %v75 = vrsqrt.pop %v73
      %v76 = vmul.f32 %v70, %v74
      %v77 = vmul.f32 %v71, %v75
      %v78 = vpack.c.bf16 %v77, %v76
      %79 = vst [vmem:[#allocation2] sm:$0xff] %v78
    $region25: #{tpu_custom_call.1} parent=1 // pred_fallthru
      _
    %v80 = vld [vmem:[#allocation2] sm:$0xff]
    %v81 = vld [vmem:[#allocation6] sm:$0xf]
    %v82 = vld [vmem:[#allocation6 + $0x4] sm:$0xf]
    %v83 = vld [vmem:[#allocation6 + $0x8] sm:$0xf]
    %v84 = vld [vmem:[#allocation6 + $0xc] sm:$0xf]
    %v85 = vld [vmem:[#allocation6 + $0x10] sm:$0xf]
    %v86 = vld [vmem:[#allocation6 + $0x14] sm:$0xf]
    %v87 = vld [vmem:[#allocation6 + $0x18] sm:$0xf]
    %v88 = vld [vmem:[#allocation6 + $0x1c] sm:$0xf]
    %v89 = vld [vmem:[#allocation6 + $0x20] sm:$0xf]
    %v90 = vld [vmem:[#allocation6 + $0x24] sm:$0xf]
    %v91 = vld [vmem:[#allocation6 + $0x28] sm:$0xf]
    %v92 = vld [vmem:[#allocation6 + $0x2c] sm:$0xf]
    %v93 = vld [vmem:[#allocation6 + $0x30] sm:$0xf]
    %v94 = vld [vmem:[#allocation6 + $0x34] sm:$0xf]
    %v95 = vld [vmem:[#allocation6 + $0x38] sm:$0xf]
    %v96 = vld [vmem:[#allocation6 + $0x3c] sm:$0xf]
    %v97 = vld [vmem:[%s2] sm:$0x1]
    %v99 = vlaneseq
    %v100 = vshrl.u32 %v99, 7
    %v101 = vsub.s32 0, %v100
    %v102 = vrot.slane %v97, %v101
    %v120 = vunpack.c.l.b16 %v81
    %v121 = vunpack.c.l.b16 %v82
    %v122 = vunpack.c.l.b16 %v83
    %v123 = vunpack.c.l.b16 %v84
    %v124 = vunpack.c.l.b16 %v85
    %v125 = vunpack.c.l.b16 %v86
    %v126 = vunpack.c.l.b16 %v87
    %v127 = vunpack.c.l.b16 %v88
    %v128 = vunpack.c.l.b16 %v89
    %v129 = vunpack.c.l.b16 %v90
    %v130 = vunpack.c.l.b16 %v91
    %v131 = vunpack.c.l.b16 %v92
    %v132 = vunpack.c.l.b16 %v93
    %v133 = vunpack.c.l.b16 %v94
    %v134 = vunpack.c.l.b16 %v95
    %v135 = vunpack.c.l.b16 %v96
    %v136 = vpack.c.b16 %v121, %v120
    %v137 = vpack.c.b16 %v123, %v122
    %v138 = vpack.c.b16 %v125, %v124
    %v139 = vpack.c.b16 %v127, %v126
    %v140 = vpack.c.b16 %v129, %v128
    %v141 = vpack.c.b16 %v131, %v130
    %v142 = vpack.c.b16 %v133, %v132
    %v143 = vpack.c.b16 %v135, %v134
    %152 = vmatprep.subr.bf16.mxu0 0
    %153 = vmatpush1.bf16.msra.mxu0 %v136
    %154 = vmatprep.subr.bf16.mxu0 0
    %155 = vmatpush1.bf16.msra.mxu0 %v137
    %156 = vmatprep.subr.bf16.mxu0 0
    %157 = vmatpush1.bf16.msra.mxu0 %v138
    %158 = vmatprep.subr.bf16.mxu0 0
    %159 = vmatpush1.bf16.msra.mxu0 %v139
    %160 = vmatprep.subr.bf16.mxu0 0
    %161 = vmatpush1.bf16.msra.mxu0 %v140
    %162 = vmatprep.subr.bf16.mxu0 0
    %163 = vmatpush1.bf16.msra.mxu0 %v141
    %164 = vmatprep.subr.bf16.mxu0 0
    %165 = vmatpush1.bf16.msra.mxu0 %v142
    %166 = vmatprep.subr.bf16.mxu0 0
    %167 = vmatpush1.bf16.msra.mxu0 %v143
    %168 = vmatprep.subr.bf16.mxu0 0
    %169 = vmatpush1.bf16.msra.mxu0 0
    %170 = vmatprep.subr.bf16.mxu0 0
    %171 = vmatpush1.bf16.msra.mxu0 0
    %172 = vmatprep.subr.bf16.mxu0 0
    %173 = vmatpush1.bf16.msra.mxu0 0
    %174 = vmatprep.subr.bf16.mxu0 0
    %175 = vmatpush1.bf16.msra.mxu0 0
    %176 = vmatprep.subr.bf16.mxu0 0
    %177 = vmatpush1.bf16.msra.mxu0 0
    %178 = vmatprep.subr.bf16.mxu0 0
    %179 = vmatpush1.bf16.msra.mxu0 0
    %180 = vmatprep.subr.bf16.mxu0 0
    %181 = vmatpush1.bf16.msra.mxu0 0
    %182 = vmatprep.subr.bf16.mxu0 0
    %183 = vmatpush1.bf16.msra.mxu0 0
    %184 = vmatprep.mubr.bf16.mxu0 0
    %185 = vmatmul.mubr.bf16.gmra.mrb[0].mxu0 %v80
    %v186 = vpop.f32.mrb[0].mxu0
    %v187 = vadd.f32 %v102, %v186
    %v188 = vpop.f32.mrb[0].mxu0
    %v189 = vpop.f32.mrb[0].mxu0
    %v190 = vadd.f32 %v102, %v189
    %v191 = vpop.f32.mrb[0].mxu0
    %192 = vdwg.mxu0
    %193 = vst [vmem:[#allocation8] sm:$0xff] %v187
    %194 = vst [vmem:[#allocation8 + $0x8] sm:$0xff] %v190
    // Predicated region
    $region26: #{tpu_custom_call.1} parent=1 // pred_check
      _
    $region27: #{tpu_custom_call.1} parent=1 // pred_check_branch
      %196 = sbr.rel (0) target = $region29
    $region28: #{tpu_custom_call.1} parent=1 // pred_region
      %s198 = ssub.s32 256, 256
      %199 = vsyncadd [#allocation5], %s198
      %s200 = sshll.u32 [#allocation8], 4
      %s201 = int_to_ptr.vmem [resolvable:$true] %s200
      %206 = dma.vmem_to_hbm [thread:$0]  %s201, 256, %s3, [#allocation5], 128, 128, 8
    $region29: #{tpu_custom_call.1} parent=1 // pred_fallthru
      _
    // Predicated region
    $region30: #{tpu_custom_call.1} parent=1 // pred_check
      _
    $region31: #{tpu_custom_call.1} parent=1 // pred_check_branch
      %208 = sbr.rel (0) target = $region33
    $region32: #{tpu_custom_call.1} parent=1 // pred_region
      %209 = dma.done [#allocation5], 256
    $region33: #{tpu_custom_call.1} parent=1 // pred_fallthru
      _
    %210 = vsyncpa [#allocation4], 1
    %211 = vsyncpa [#allocation7], 1
    %212 = vsyncpa [#allocation5], 1

</llo_original>
